<compile_context>
chip_gen: v6e
topology: v6e:2x2x1
jax: 0.10.0
libtpu: 0.0.40
codegen_flags: <defaults>
</compile_context>

<pallas_src>
import functools

import jax
import jax.numpy as jnp
from jax.experimental import pallas as pl
from jax.experimental.pallas import tpu as pltpu


def _round_up(n, m):
    return ((n + m - 1) // m) * m


def _policy_kernel(xT_ref, w1T_ref, b1_ref, whT_ref, bhT_ref, out_ref, *, action_dim):
    xT = xT_ref[...]                     # [S, TILE_B]   (batch on lanes)
    w1T = w1T_ref[...]                   # [H, S]
    state_dim = xT_ref.shape[0]

    # ---- fc1 + relu on the VPU: K = state_dim rank-1 broadcast FMAs ----
    hT = w1T[:, 0:1] * xT[0:1, :]                        # [H, TILE_B]
    for k in range(1, state_dim):                        # static -> unrolled
        hT = hT + w1T[:, k : k + 1] * xT[k : k + 1, :]
    hT = jnp.maximum(hT + b1_ref[...], 0.0)              # [H, TILE_B]

    # ---- fused heads: single MXU matmul, lane-dense result [2A, TILE_B] ----
    zT = (
        jnp.dot(whT_ref[...], hT, preferred_element_type=jnp.float32)
        + bhT_ref[...]
    )                                                    # [2A, TILE_B]

    # Rows 0..A-1 -> 2*tanh (mu); rows A..2A-1 -> softplus (std), stable form.
    row = jax.lax.broadcasted_iota(jnp.int32, zT.shape, dimension=0)
    mu = 2.0 * jnp.tanh(zT)
    std = jnp.maximum(zT, 0.0) + jnp.log1p(jnp.exp(-jnp.abs(zT)))
    out_ref[...] = jnp.where(row < action_dim, mu, std)


def prepare_policy_params(w1, b1, w_mu, b_mu, w_std, b_std):
    """One-time layout plumbing: transpose / fuse the head weights."""
    hidden_dim = w1.shape[1]
    action_dim = w_mu.shape[1]
    w1T = w1.T                                                        # [H, S]
    b1c = b1.reshape(hidden_dim, 1)                                   # [H, 1]
    whT = jnp.concatenate([w_mu.T, w_std.T], axis=0)                  # [2A, H]
    bhc = jnp.concatenate(
        [b_mu.reshape(action_dim, 1), b_std.reshape(action_dim, 1)], axis=0
    )                                                                 # [2A, 1]
    return w1T, b1c, whT, bhc


def policy_net_continuous_prepared(x, w1T, b1c, whT, bhc, *, tile_b=None):
    batch, state_dim = x.shape
    hidden_dim = w1T.shape[0]
    two_a = whT.shape[0]
    action_dim = two_a // 2

    # Batch tiling on the LANE axis: multiple of 128, big cap to amortize
    # per-grid-step overhead; keep >= 2 grid steps when batch allows (v7x).
    if tile_b is None:
        tile_b = min(2048, _round_up(batch, 128))
        if batch > 128 and _round_up(batch, tile_b) // tile_b < 2:
            tile_b = max(128, _round_up(tile_b // 2, 128))
    else:
        if tile_b <= 0 or tile_b % 128 != 0:
            raise ValueError(
                f"tile_b must be a positive multiple of 128 (lane axis), got {tile_b}"
            )

    padded = _round_up(batch, tile_b)

    # Feature-major input: [S, padded]  (lane-dense DMA).
    xT = x.T
    if padded != batch:
        xT = jnp.pad(xT, ((0, 0), (0, padded - batch)))

    grid = (padded // tile_b,)
    kernel = functools.partial(_policy_kernel, action_dim=action_dim)

    out = pl.pallas_call(
        kernel,
        out_shape=jax.ShapeDtypeStruct((two_a, padded), jnp.float32),
        grid=grid,
        in_specs=[
            pl.BlockSpec((state_dim, tile_b), lambda i: (0, i)),   # x^T tile
            pl.BlockSpec((hidden_dim, state_dim), lambda i: (0, 0)),  # w1^T (resident)
            pl.BlockSpec((hidden_dim, 1), lambda i: (0, 0)),       # b1    (resident)
            pl.BlockSpec((two_a, hidden_dim), lambda i: (0, 0)),   # fused head W^T
            pl.BlockSpec((two_a, 1), lambda i: (0, 0)),            # fused head b
        ],
        out_specs=pl.BlockSpec((two_a, tile_b), lambda i: (0, i)),
        compiler_params=pltpu.CompilerParams(dimension_semantics=("parallel",)),
    )(xT, w1T, b1c, whT, bhc)

    mu = out[:action_dim, :batch].T      # [batch, A]
    std = out[action_dim:, :batch].T     # [batch, A]
    return mu, std


def policy_net_continuous(x, w1, b1, w_mu, b_mu, w_std, b_std, *, tile_b=None):
    """Convenience wrapper taking raw (un-fused) parameters."""
    params = prepare_policy_params(w1, b1, w_mu, b_mu, w_std, b_std)
    return policy_net_continuous_prepared(x, *params, tile_b=tile_b)


def _init_linear(key, in_features, out_features):
    # Mimic PyTorch default init: U(-1/sqrt(fan_in), 1/sqrt(fan_in)).
    kw, kb = jax.random.split(key)
    bound = 1.0 / jnp.sqrt(jnp.float32(in_features))
    # Stored as [in, out] (transposed vs. torch's [out, in]) for x @ W.
    w = jax.random.uniform(kw, (in_features, out_features), jnp.float32, -bound, bound)
    b = jax.random.uniform(kb, (out_features,), jnp.float32, -bound, bound)
    return w, b


if __name__ == "__main__":
    state_dim, action_dim, hidden_dim = 2, 1, 128
    batch = 8

    key = jax.random.PRNGKey(0)
    kx, k1, k2, k3 = jax.random.split(key, 4)

    x = jax.random.normal(kx, (batch, state_dim), jnp.float32)
    w1, b1 = _init_linear(k1, state_dim, hidden_dim)
    w_mu, b_mu = _init_linear(k2, hidden_dim, action_dim)
    w_std, b_std = _init_linear(k3, hidden_dim, action_dim)

    # Prepare (fuse/transpose) params once, then call the kernel.
    params = prepare_policy_params(w1, b1, w_mu, b_mu, w_std, b_std)
    mu, std = policy_net_continuous_prepared(x, *params)
    jax.block_until_ready((mu, std))

    # Reference check in plain JAX.
    h_ref = jnp.maximum(x @ w1 + b1[None, :], 0.0)
    mu_ref = 2.0 * jnp.tanh(h_ref @ w_mu + b_mu[None, :])
    std_ref = jax.nn.softplus(h_ref @ w_std + b_std[None, :])
    assert mu.shape == (batch, action_dim) and std.shape == (batch, action_dim)
    assert jnp.allclose(mu, mu_ref, atol=1e-5), "mu mismatch"
    assert jnp.allclose(std, std_ref, atol=1e-5), "std mismatch"

    print("KERNEL_OK")
</pallas_src>

<mosaic_0001>
module attributes {stable_mosaic.version = 11 : i64} {
  func.func @_policy_kernel(%arg0: i32, %arg1: memref<2x128xf32, #tpu.memory_space<vmem>>, %arg2: memref<128x2xf32, #tpu.memory_space<vmem>>, %arg3: memref<128x1xf32, #tpu.memory_space<vmem>>, %arg4: memref<2x128xf32, #tpu.memory_space<vmem>>, %arg5: memref<2x1xf32, #tpu.memory_space<vmem>>, %arg6: memref<2x128xf32, #tpu.memory_space<vmem>>) attributes {dimension_semantics = [#tpu.dimension_semantics<parallel>], iteration_bounds = array<i64: 1>, scalar_prefetch = 0 : i64, scratch_operands = 0 : i64, tpu.core_type = #tpu.core_type<tc>, window_params = [{transform_indices = @transform_0, window_bounds = array<i64: 2, 128>}, {pipeline_mode = #tpu.pipeline_mode<synchronous>, transform_indices = @transform_1, window_bounds = array<i64: 128, 2>}, {pipeline_mode = #tpu.pipeline_mode<synchronous>, transform_indices = @transform_2, window_bounds = array<i64: 128, 1>}, {pipeline_mode = #tpu.pipeline_mode<synchronous>, transform_indices = @transform_3, window_bounds = array<i64: 2, 128>}, {pipeline_mode = #tpu.pipeline_mode<synchronous>, transform_indices = @transform_4, window_bounds = array<i64: 2, 1>}, {transform_indices = @transform_5, window_bounds = array<i64: 2, 128>}]} {
    %c0 = arith.constant 0 : index
    %c0_0 = arith.constant 0 : index
    %0 = vector.load %arg1[%c0, %c0_0] : memref<2x128xf32, #tpu.memory_space<vmem>>, vector<2x128xf32>
    %c0_1 = arith.constant 0 : index
    %c0_2 = arith.constant 0 : index
    %1 = vector.load %arg2[%c0_1, %c0_2] : memref<128x2xf32, #tpu.memory_space<vmem>>, vector<128x2xf32>
    %2 = vector.extract_strided_slice %1 {offsets = [0, 0], sizes = [128, 1], strides = [1, 1]} : vector<128x2xf32> to vector<128x1xf32>
    %3 = vector.extract_strided_slice %0 {offsets = [0, 0], sizes = [1, 128], strides = [1, 1]} : vector<2x128xf32> to vector<1x128xf32>
    %4 = vector.broadcast %2 : vector<128x1xf32> to vector<128x128xf32>
    %5 = vector.broadcast %3 : vector<1x128xf32> to vector<128x128xf32>
    %6 = arith.mulf %4, %5 : vector<128x128xf32>
    %7 = vector.extract_strided_slice %1 {offsets = [0, 1], sizes = [128, 1], strides = [1, 1]} : vector<128x2xf32> to vector<128x1xf32>
    %8 = vector.extract_strided_slice %0 {offsets = [1, 0], sizes = [1, 128], strides = [1, 1]} : vector<2x128xf32> to vector<1x128xf32>
    %9 = vector.broadcast %7 : vector<128x1xf32> to vector<128x128xf32>
    %10 = vector.broadcast %8 : vector<1x128xf32> to vector<128x128xf32>
    %11 = arith.mulf %9, %10 : vector<128x128xf32>
    %12 = arith.addf %6, %11 : vector<128x128xf32>
    %c0_3 = arith.constant 0 : index
    %c0_4 = arith.constant 0 : index
    %13 = vector.load %arg3[%c0_3, %c0_4] : memref<128x1xf32, #tpu.memory_space<vmem>>, vector<128x1xf32>
    %14 = vector.broadcast %13 : vector<128x1xf32> to vector<128x128xf32>
    %15 = arith.addf %12, %14 : vector<128x128xf32>
    %cst = arith.constant 0.000000e+00 : f32
    %16 = vector.broadcast %cst : f32 to vector<128x128xf32>
    %17 = arith.maximumf %15, %16 : vector<128x128xf32>
    %c0_5 = arith.constant 0 : index
    %c0_6 = arith.constant 0 : index
    %18 = vector.load %arg4[%c0_5, %c0_6] : memref<2x128xf32, #tpu.memory_space<vmem>>, vector<2x128xf32>
    %cst_7 = arith.constant dense<0.000000e+00> : vector<2x128xf32>
    %19 = tpu.matmul %18, %17, %cst_7 {dimension_numbers = #tpu.dot_dimension_numbers<[1], [0], [0], [1], [0, 0, 1, 1], [], []>} : vector<2x128xf32>, vector<128x128xf32>, vector<2x128xf32> -> vector<2x128xf32>
    %c0_8 = arith.constant 0 : index
    %c0_9 = arith.constant 0 : index
    %20 = vector.load %arg5[%c0_8, %c0_9] : memref<2x1xf32, #tpu.memory_space<vmem>>, vector<2x1xf32>
    %21 = vector.broadcast %20 : vector<2x1xf32> to vector<2x128xf32>
    %22 = arith.addf %19, %21 : vector<2x128xf32>
    %23 = tpu.iota {dimensions = array<i32: 0>} : vector<2x128xi32>
    %24 = math.tanh %22 : vector<2x128xf32>
    %cst_10 = arith.constant 2.000000e+00 : f32
    %25 = vector.broadcast %cst_10 : f32 to vector<2x128xf32>
    %26 = arith.mulf %25, %24 : vector<2x128xf32>
    %cst_11 = arith.constant 0.000000e+00 : f32
    %27 = vector.broadcast %cst_11 : f32 to vector<2x128xf32>
    %28 = arith.maximumf %22, %27 : vector<2x128xf32>
    %29 = math.absf %22 : vector<2x128xf32>
    %cst_12 = arith.constant 0.000000e+00 : f32
    %30 = vector.broadcast %cst_12 : f32 to vector<2x128xf32>
    %31 = arith.subf %30, %29 : vector<2x128xf32>
    %32 = math.exp %31 : vector<2x128xf32>
    %33 = math.log1p %32 : vector<2x128xf32>
    %34 = arith.addf %28, %33 : vector<2x128xf32>
    %c1_i32 = arith.constant 1 : i32
    %35 = vector.broadcast %c1_i32 : i32 to vector<2x128xi32>
    %36 = arith.cmpi slt, %23, %35 : vector<2x128xi32>
    %37 = arith.select %36, %26, %34 : vector<2x128xi1>, vector<2x128xf32>
    %c0_13 = arith.constant 0 : index
    %c0_14 = arith.constant 0 : index
    %38 = vector.load %arg6[%c0_13, %c0_14] : memref<2x128xf32, #tpu.memory_space<vmem>>, vector<2x128xf32>
    tpu.vector_store %arg6[%c0_13, %c0_14], %37 {strides = array<i32>} : memref<2x128xf32, #tpu.memory_space<vmem>>, vector<2x128xf32>,
    return
  }
  func.func @transform_0(%arg0: i32) -> (i32, i32) {
    %c0_i32 = arith.constant 0 : i32
    %c0_i32_0 = arith.constant 0 : i32
    return %c0_i32, %arg0 : i32, i32
  }
  func.func @transform_1(%arg0: i32) -> (i32, i32) {
    %c0_i32 = arith.constant 0 : i32
    %c0_i32_0 = arith.constant 0 : i32
    %c0_i32_1 = arith.constant 0 : i32
    return %c0_i32, %c0_i32_0 : i32, i32
  }
  func.func @transform_2(%arg0: i32) -> (i32, i32) {
    %c0_i32 = arith.constant 0 : i32
    %c0_i32_0 = arith.constant 0 : i32
    %c0_i32_1 = arith.constant 0 : i32
    return %c0_i32, %c0_i32_0 : i32, i32
  }
  func.func @transform_3(%arg0: i32) -> (i32, i32) {
    %c0_i32 = arith.constant 0 : i32
    %c0_i32_0 = arith.constant 0 : i32
    %c0_i32_1 = arith.constant 0 : i32
    return %c0_i32, %c0_i32_0 : i32, i32
  }
  func.func @transform_4(%arg0: i32) -> (i32, i32) {
    %c0_i32 = arith.constant 0 : i32
    %c0_i32_0 = arith.constant 0 : i32
    %c0_i32_1 = arith.constant 0 : i32
    return %c0_i32, %c0_i32_0 : i32, i32
  }
  func.func @transform_5(%arg0: i32) -> (i32, i32) {
    %c0_i32 = arith.constant 0 : i32
    %c0_i32_0 = arith.constant 0 : i32
    return %c0_i32, %arg0 : i32, i32
  }
}

</mosaic_0001>

<llo_original>
// kernel: tpu_custom_call.1
$region0: #{tpu_custom_call.1}
  #allocation0 [shape = 'u32[]', space=smem, size = 0x4, offset = 0x4, fixed_abs, tag = 'smem constant byte address 0x4 - core index']
  #allocation1 [shape = 'u32[144,128]{1,0:T(1,128)}', space=vmem, size = 0x12000, scoped, tag = 'internal scratch']
  %s0 = inlined_call_operand.vmem [shape: f32[2,128], index: 0, kind: input, shape index: {}]
  %s1 = inlined_call_operand.vmem [shape: f32[128,2], index: 1, kind: input, shape index: {}]
  %s2 = inlined_call_operand.vmem [shape: f32[128,1], index: 2, kind: input, shape index: {}]
  %s3 = inlined_call_operand.vmem [shape: f32[2,128], index: 3, kind: input, shape index: {}]
  %s4 = inlined_call_operand.vmem [shape: f32[2,1], index: 4, kind: input, shape index: {}]
  %s5 = inlined_call_operand.hbm [shape: f32[2,128], index: 5, kind: output, shape index: {}]
  %s6 = sld [smem:[#allocation0]]
  $region30: #{tpu_custom_call.1} parent=0
    _
  %s8 = ssub.s32 1, %s6
  %s9 = scalar_select 0, %s8, %s6
  $region1: #{tpu_custom_call.1} parent=0
    #allocation2 [shape = 'u8[1024]{0}', space=vmem, size = 0x400, scoped, tag = 'output window, operand 0, single buffered']
    #allocation3 [shape = 's32[1]{0}', space=sflag, size = 0x4, scoped, tag = 'scoped memory for tpu_custom_call.1']
    %10 = vsyncpa [#allocation3], 0
    // Predicated region
    $region2: #{tpu_custom_call.1} parent=1 // pred_check
      _
    $region3: #{tpu_custom_call.1} parent=1 // pred_check_branch
      %12 = sbr.rel (0) target = $region5
    $region4: #{tpu_custom_call.1} parent=1 // pred_region
      _
    $region5: #{tpu_custom_call.1} parent=1 // pred_fallthru
      _
    // Predicated region
    $region6: #{tpu_custom_call.1} parent=1 // pred_check
      _
    $region7: #{tpu_custom_call.1} parent=1 // pred_check_branch
      %14 = sbr.rel (0) target = $region9
    $region8: #{tpu_custom_call.1} parent=1 // pred_region
      _
    $region9: #{tpu_custom_call.1} parent=1 // pred_fallthru
      _
    // Predicated region
    $region10: #{tpu_custom_call.1} parent=1 // pred_check
      _
    $region11: #{tpu_custom_call.1} parent=1 // pred_check_branch
      %16 = sbr.rel (0) target = $region13
    $region12: #{tpu_custom_call.1} parent=1 // pred_region
      _
    $region13: #{tpu_custom_call.1} parent=1 // pred_fallthru
      _
    // Predicated region
    $region14: #{tpu_custom_call.1} parent=1 // pred_check
      _
    $region15: #{tpu_custom_call.1} parent=1 // pred_check_branch
      %18 = sbr.rel (0) target = $region17
    $region16: #{tpu_custom_call.1} parent=1 // pred_region
      _
    $region17: #{tpu_custom_call.1} parent=1 // pred_fallthru
      _
    // Predicated region
    $region18: #{tpu_custom_call.1} parent=1 // pred_check
      _
    $region19: #{tpu_custom_call.1} parent=1 // pred_check_branch
      %20 = sbr.rel (0) target = $region21
    $region20: #{tpu_custom_call.1} parent=1 // pred_region
      _
    $region21: #{tpu_custom_call.1} parent=1 // pred_fallthru
      _
    %v21 = vld [vmem:[%s0] sm:$0x3]
    %v22 = vld [vmem:[%s1] sm:$0xff]
    %v23 = vld [vmem:[%s1 + $0x8] sm:$0xff]
    %v24 = vld [vmem:[%s1 + $0x10] sm:$0xff]
    %v25 = vld [vmem:[%s1 + $0x18] sm:$0xff]
    %v26 = vld [vmem:[%s1 + $0x20] sm:$0xff]
    %v27 = vld [vmem:[%s1 + $0x28] sm:$0xff]
    %v28 = vld [vmem:[%s1 + $0x30] sm:$0xff]
    %v29 = vld [vmem:[%s1 + $0x38] sm:$0xff]
    %v30 = vld [vmem:[%s1 + $0x40] sm:$0xff]
    %v31 = vld [vmem:[%s1 + $0x48] sm:$0xff]
    %v32 = vld [vmem:[%s1 + $0x50] sm:$0xff]
    %v33 = vld [vmem:[%s1 + $0x58] sm:$0xff]
    %v34 = vld [vmem:[%s1 + $0x60] sm:$0xff]
    %v35 = vld [vmem:[%s1 + $0x68] sm:$0xff]
    %v36 = vld [vmem:[%s1 + $0x70] sm:$0xff]
    %v37 = vld [vmem:[%s1 + $0x78] sm:$0xff]
    %39 = vset.pattern.permute.xlu0 0
    %40 = vperm.xlu0 %39, %v22
    %v41 = vpop.permute.xlu0 %40
    %44 = vset.pattern.permute.xlu0 0
    %45 = vperm.xlu0 %44, %v23
    %v46 = vpop.permute.xlu0 %45
    %49 = vset.pattern.permute.xlu0 0
    %50 = vperm.xlu0 %49, %v24
    %v51 = vpop.permute.xlu0 %50
    %54 = vset.pattern.permute.xlu0 0
    %55 = vperm.xlu0 %54, %v25
    %v56 = vpop.permute.xlu0 %55
    %59 = vset.pattern.permute.xlu0 0
    %60 = vperm.xlu0 %59, %v26
    %v61 = vpop.permute.xlu0 %60
    %64 = vset.pattern.permute.xlu0 0
    %65 = vperm.xlu0 %64, %v27
    %v66 = vpop.permute.xlu0 %65
    %69 = vset.pattern.permute.xlu0 0
    %70 = vperm.xlu0 %69, %v28
    %v71 = vpop.permute.xlu0 %70
    %74 = vset.pattern.permute.xlu0 0
    %75 = vperm.xlu0 %74, %v29
    %v76 = vpop.permute.xlu0 %75
    %79 = vset.pattern.permute.xlu0 0
    %80 = vperm.xlu0 %79, %v30
    %v81 = vpop.permute.xlu0 %80
    %84 = vset.pattern.permute.xlu0 0
    %85 = vperm.xlu0 %84, %v31
    %v86 = vpop.permute.xlu0 %85
    %89 = vset.pattern.permute.xlu0 0
    %90 = vperm.xlu0 %89, %v32
    %v91 = vpop.permute.xlu0 %90
    %94 = vset.pattern.permute.xlu0 0
    %95 = vperm.xlu0 %94, %v33
    %v96 = vpop.permute.xlu0 %95
    %99 = vset.pattern.permute.xlu0 0
    %100 = vperm.xlu0 %99, %v34
    %v101 = vpop.permute.xlu0 %100
    %104 = vset.pattern.permute.xlu0 0
    %105 = vperm.xlu0 %104, %v35
    %v106 = vpop.permute.xlu0 %105
    %109 = vset.pattern.permute.xlu0 0
    %110 = vperm.xlu0 %109, %v36
    %v111 = vpop.permute.xlu0 %110
    %114 = vset.pattern.permute.xlu0 0
    %115 = vperm.xlu0 %114, %v37
    %v116 = vpop.permute.xlu0 %115
    %v118 = vlaneseq
    %v119 = vshrl.u32 %v118, 7
    %v120 = vsub.s32 0, %v119
    %v121 = vrot.slane %v21, %v120
    %v122 = vmul.f32 %v41, %v121
    %v123 = vmul.f32 %v46, %v121
    %v124 = vmul.f32 %v51, %v121
    %v125 = vmul.f32 %v56, %v121
    %v126 = vmul.f32 %v61, %v121
    %v127 = vmul.f32 %v66, %v121
    %v128 = vmul.f32 %v71, %v121
    %v129 = vmul.f32 %v76, %v121
    %v130 = vmul.f32 %v81, %v121
    %v131 = vmul.f32 %v86, %v121
    %v132 = vmul.f32 %v91, %v121
    %v133 = vmul.f32 %v96, %v121
    %v134 = vmul.f32 %v101, %v121
    %v135 = vmul.f32 %v106, %v121
    %v136 = vmul.f32 %v111, %v121
    %v137 = vmul.f32 %v116, %v121
    %138 = vset.pattern.permute.xlu0 1
    %139 = vperm.xlu0 %138, %v22
    %v140 = vpop.permute.xlu0 %139
    %142 = vset.pattern.permute.xlu0 1
    %143 = vperm.xlu0 %142, %v23
    %v144 = vpop.permute.xlu0 %143
    %146 = vset.pattern.permute.xlu0 1
    %147 = vperm.xlu0 %146, %v24
    %v148 = vpop.permute.xlu0 %147
    %150 = vset.pattern.permute.xlu0 1
    %151 = vperm.xlu0 %150, %v25
    %v152 = vpop.permute.xlu0 %151
    %154 = vset.pattern.permute.xlu0 1
    %155 = vperm.xlu0 %154, %v26
    %v156 = vpop.permute.xlu0 %155
    %158 = vset.pattern.permute.xlu0 1
    %159 = vperm.xlu0 %158, %v27
    %v160 = vpop.permute.xlu0 %159
    %162 = vset.pattern.permute.xlu0 1
    %163 = vperm.xlu0 %162, %v28
    %v164 = vpop.permute.xlu0 %163
    %166 = vset.pattern.permute.xlu0 1
    %167 = vperm.xlu0 %166, %v29
    %v168 = vpop.permute.xlu0 %167
    %170 = vset.pattern.permute.xlu0 1
    %171 = vperm.xlu0 %170, %v30
    %v172 = vpop.permute.xlu0 %171
    %174 = vset.pattern.permute.xlu0 1
    %175 = vperm.xlu0 %174, %v31
    %v176 = vpop.permute.xlu0 %175
    %178 = vset.pattern.permute.xlu0 1
    %179 = vperm.xlu0 %178, %v32
    %v180 = vpop.permute.xlu0 %179
    %182 = vset.pattern.permute.xlu0 1
    %183 = vperm.xlu0 %182, %v33
    %v184 = vpop.permute.xlu0 %183
    %186 = vset.pattern.permute.xlu0 1
    %187 = vperm.xlu0 %186, %v34
    %v188 = vpop.permute.xlu0 %187
    %190 = vset.pattern.permute.xlu0 1
    %191 = vperm.xlu0 %190, %v35
    %v192 = vpop.permute.xlu0 %191
    %194 = vset.pattern.permute.xlu0 1
    %195 = vperm.xlu0 %194, %v36
    %v196 = vpop.permute.xlu0 %195
    %198 = vset.pattern.permute.xlu0 1
    %199 = vperm.xlu0 %198, %v37
    %v200 = vpop.permute.xlu0 %199
    %v202 = vlaneseq
    %v203 = vshrl.u32 %v202, 7
    %v204 = vsub.s32 1, %v203
    %v205 = vrot.slane %v21, %v204
    %v206 = vmul.f32 %v140, %v205
    %v207 = vmul.f32 %v144, %v205
    %v208 = vmul.f32 %v148, %v205
    %v209 = vmul.f32 %v152, %v205
    %v210 = vmul.f32 %v156, %v205
    %v211 = vmul.f32 %v160, %v205
    %v212 = vmul.f32 %v164, %v205
    %v213 = vmul.f32 %v168, %v205
    %v214 = vmul.f32 %v172, %v205
    %v215 = vmul.f32 %v176, %v205
    %v216 = vmul.f32 %v180, %v205
    %v217 = vmul.f32 %v184, %v205
    %v218 = vmul.f32 %v188, %v205
    %v219 = vmul.f32 %v192, %v205
    %v220 = vmul.f32 %v196, %v205
    %v221 = vmul.f32 %v200, %v205
    %v222 = vadd.f32 %v122, %v206
    %v223 = vadd.f32 %v123, %v207
    %v224 = vadd.f32 %v124, %v208
    %v225 = vadd.f32 %v125, %v209
    %v226 = vadd.f32 %v126, %v210
    %v227 = vadd.f32 %v127, %v211
    %v228 = vadd.f32 %v128, %v212
    %v229 = vadd.f32 %v129, %v213
    %v230 = vadd.f32 %v130, %v214
    %v231 = vadd.f32 %v131, %v215
    %v232 = vadd.f32 %v132, %v216
    %v233 = vadd.f32 %v133, %v217
    %v234 = vadd.f32 %v134, %v218
    %v235 = vadd.f32 %v135, %v219
    %v236 = vadd.f32 %v136, %v220
    %v237 = vadd.f32 %v137, %v221
    %v238 = vld [vmem:[%s2] sm:$0xff]
    %v239 = vld [vmem:[%s2 + $0x8] sm:$0xff]
    %v240 = vld [vmem:[%s2 + $0x10] sm:$0xff]
    %v241 = vld [vmem:[%s2 + $0x18] sm:$0xff]
    %v242 = vld [vmem:[%s2 + $0x20] sm:$0xff]
    %v243 = vld [vmem:[%s2 + $0x28] sm:$0xff]
    %v244 = vld [vmem:[%s2 + $0x30] sm:$0xff]
    %v245 = vld [vmem:[%s2 + $0x38] sm:$0xff]
    %v246 = vld [vmem:[%s2 + $0x40] sm:$0xff]
    %v247 = vld [vmem:[%s2 + $0x48] sm:$0xff]
    %v248 = vld [vmem:[%s2 + $0x50] sm:$0xff]
    %v249 = vld [vmem:[%s2 + $0x58] sm:$0xff]
    %v250 = vld [vmem:[%s2 + $0x60] sm:$0xff]
    %v251 = vld [vmem:[%s2 + $0x68] sm:$0xff]
    %v252 = vld [vmem:[%s2 + $0x70] sm:$0xff]
    %v253 = vld [vmem:[%s2 + $0x78] sm:$0xff]
    %255 = vset.pattern.permute.xlu0 0
    %256 = vperm.xlu0 %255, %v238
    %v257 = vpop.permute.xlu0 %256
    %260 = vset.pattern.permute.xlu0 0
    %261 = vperm.xlu0 %260, %v239
    %v262 = vpop.permute.xlu0 %261
    %265 = vset.pattern.permute.xlu0 0
    %266 = vperm.xlu0 %265, %v240
    %v267 = vpop.permute.xlu0 %266
    %270 = vset.pattern.permute.xlu0 0
    %271 = vperm.xlu0 %270, %v241
    %v272 = vpop.permute.xlu0 %271
    %275 = vset.pattern.permute.xlu0 0
    %276 = vperm.xlu0 %275, %v242
    %v277 = vpop.permute.xlu0 %276
    %280 = vset.pattern.permute.xlu0 0
    %281 = vperm.xlu0 %280, %v243
    %v282 = vpop.permute.xlu0 %281
    %285 = vset.pattern.permute.xlu0 0
    %286 = vperm.xlu0 %285, %v244
    %v287 = vpop.permute.xlu0 %286
    %290 = vset.pattern.permute.xlu0 0
    %291 = vperm.xlu0 %290, %v245
    %v292 = vpop.permute.xlu0 %291
    %295 = vset.pattern.permute.xlu0 0
    %296 = vperm.xlu0 %295, %v246
    %v297 = vpop.permute.xlu0 %296
    %300 = vset.pattern.permute.xlu0 0
    %301 = vperm.xlu0 %300, %v247
    %v302 = vpop.permute.xlu0 %301
    %305 = vset.pattern.permute.xlu0 0
    %306 = vperm.xlu0 %305, %v248
    %v307 = vpop.permute.xlu0 %306
    %310 = vset.pattern.permute.xlu0 0
    %311 = vperm.xlu0 %310, %v249
    %v312 = vpop.permute.xlu0 %311
    %315 = vset.pattern.permute.xlu0 0
    %316 = vperm.xlu0 %315, %v250
    %v317 = vpop.permute.xlu0 %316
    %320 = vset.pattern.permute.xlu0 0
    %321 = vperm.xlu0 %320, %v251
    %v322 = vpop.permute.xlu0 %321
    %325 = vset.pattern.permute.xlu0 0
    %326 = vperm.xlu0 %325, %v252
    %v327 = vpop.permute.xlu0 %326
    %330 = vset.pattern.permute.xlu0 0
    %331 = vperm.xlu0 %330, %v253
    %v332 = vpop.permute.xlu0 %331
    %v334 = vadd.f32 %v222, %v257
    %v335 = vadd.f32 %v223, %v262
    %v336 = vadd.f32 %v224, %v267
    %v337 = vadd.f32 %v225, %v272
    %v338 = vadd.f32 %v226, %v277
    %v339 = vadd.f32 %v227, %v282
    %v340 = vadd.f32 %v228, %v287
    %v341 = vadd.f32 %v229, %v292
    %v342 = vadd.f32 %v230, %v297
    %v343 = vadd.f32 %v231, %v302
    %v344 = vadd.f32 %v232, %v307
    %v345 = vadd.f32 %v233, %v312
    %v346 = vadd.f32 %v234, %v317
    %v347 = vadd.f32 %v235, %v322
    %v348 = vadd.f32 %v236, %v327
    %v349 = vadd.f32 %v237, %v332
    %v350 = vmax.f32 %v334, 0.0
    %v351 = vmax.f32 %v335, 0.0
    %v352 = vmax.f32 %v336, 0.0
    %v353 = vmax.f32 %v337, 0.0
    %v354 = vmax.f32 %v338, 0.0
    %v355 = vmax.f32 %v339, 0.0
    %v356 = vmax.f32 %v340, 0.0
    %v357 = vmax.f32 %v341, 0.0
    %v358 = vmax.f32 %v342, 0.0
    %v359 = vmax.f32 %v343, 0.0
    %v360 = vmax.f32 %v344, 0.0
    %v361 = vmax.f32 %v345, 0.0
    %v362 = vmax.f32 %v346, 0.0
    %v363 = vmax.f32 %v347, 0.0
    %v364 = vmax.f32 %v348, 0.0
    %v365 = vmax.f32 %v349, 0.0
    %v366 = vld [vmem:[%s3] sm:$0x3]
    %v367 = vld [vmem:[%s4] sm:$0x3]
    %369 = vset.pattern.permute.xlu0 0
    %370 = vperm.xlu0 %369, %v367
    %v371 = vpop.permute.xlu0 %370
    %373 = vmatprep.subr.mxu0 0.0
    %374 = vmatpush1.msra.mxu0 %v365
    %375 = vmatprep.subr.mxu0 0.0
    %376 = vmatpush1.msra.mxu0 %v364
    %377 = vmatprep.subr.mxu0 0.0
    %378 = vmatpush1.msra.mxu0 %v363
    %379 = vmatprep.subr.mxu0 0.0
    %380 = vmatpush1.msra.mxu0 %v362
    %381 = vmatprep.subr.mxu0 0.0
    %382 = vmatpush1.msra.mxu0 %v361
    %383 = vmatprep.subr.mxu0 0.0
    %384 = vmatpush1.msra.mxu0 %v360
    %385 = vmatprep.subr.mxu0 0.0
    %386 = vmatpush1.msra.mxu0 %v359
    %387 = vmatprep.subr.mxu0 0.0
    %388 = vmatpush1.msra.mxu0 %v358
    %389 = vmatprep.subr.mxu0 0.0
    %390 = vmatpush1.msra.mxu0 %v357
    %391 = vmatprep.subr.mxu0 0.0
    %392 = vmatpush1.msra.mxu0 %v356
    %393 = vmatprep.subr.mxu0 0.0
    %394 = vmatpush1.msra.mxu0 %v355
    %395 = vmatprep.subr.mxu0 0.0
    %396 = vmatpush1.msra.mxu0 %v354
    %397 = vmatprep.subr.mxu0 0.0
    %398 = vmatpush1.msra.mxu0 %v353
    %399 = vmatprep.subr.mxu0 0.0
    %400 = vmatpush1.msra.mxu0 %v352
    %401 = vmatprep.subr.mxu0 0.0
    %402 = vmatpush1.msra.mxu0 %v351
    %403 = vmatprep.subr.mxu0 0.0
    %404 = vmatpush1.msra.mxu0 %v350
    %405 = vmatprep.subr.mxu0 0.0
    %406 = vmatpush2.msra.mxu0 0.0
    %407 = vmatprep.subr.mxu0 0.0
    %408 = vmatpush2.msra.mxu0 0.0
    %409 = vmatprep.subr.mxu0 0.0
    %410 = vmatpush2.msra.mxu0 0.0
    %411 = vmatprep.subr.mxu0 0.0
    %412 = vmatpush2.msra.mxu0 0.0
    %413 = vmatprep.subr.mxu0 0.0
    %414 = vmatpush2.msra.mxu0 0.0
    %415 = vmatprep.subr.mxu0 0.0
    %416 = vmatpush2.msra.mxu0 0.0
    %417 = vmatprep.subr.mxu0 0.0
    %418 = vmatpush2.msra.mxu0 0.0
    %419 = vmatprep.subr.mxu0 0.0
    %420 = vmatpush2.msra.mxu0 0.0
    %421 = vmatprep.subr.mxu0 0.0
    %422 = vmatpush2.msra.mxu0 0.0
    %423 = vmatprep.subr.mxu0 0.0
    %424 = vmatpush2.msra.mxu0 0.0
    %425 = vmatprep.subr.mxu0 0.0
    %426 = vmatpush2.msra.mxu0 0.0
    %427 = vmatprep.subr.mxu0 0.0
    %428 = vmatpush2.msra.mxu0 0.0
    %429 = vmatprep.subr.mxu0 0.0
    %430 = vmatpush2.msra.mxu0 0.0
    %431 = vmatprep.subr.mxu0 0.0
    %432 = vmatpush2.msra.mxu0 0.0
    %433 = vmatprep.subr.mxu0 0.0
    %434 = vmatpush2.msra.mxu0 0.0
    %435 = vmatprep.subr.mxu0 0.0
    %436 = vmatpush2.msra.mxu0 0.0
    %437 = vmatprep.mubr.f32.mxu0 0.0
    %438 = vmatmul.mubr.f32.gmra.mxu0 %v366
    %v439 = vpop.f32.mrf.mxu0
    %v440 = vadd.f32 %v371, %v439
    %v441 = vpop.f32.mrf.mxu0
    %442 = vdwg.mxu0
    %v443 = vlaneseq
    %v444 = vshrl.u32 %v443, 7
    %v445 = vtanh.pop %v440
    %v446 = vmul.f32 %v445, 2.0
    %v447 = vmax.f32 %v440, 0.0
    %v448 = vand.u32 2147483647, %v440
    %v449 = vsub.f32 0.0, %v448
    %v450 = vmul.f32 %v449, 1.442695
    %v451 = vpow.pop %v450
    %v452 = vadd.f32 %v451, 1.0
    %v453 = vlog2.pop %v452
    %v454 = vmul.f32 %v453, 0.6931472
    %v455 = vmul.f32 -0.5, %v451
    %v456 = vadd.f32 %v455, 1.0
    %v457 = vmul.f32 %v456, %v451
    %v458 = vand.u32 2147483647, %v451
    %vm459 = vcmp.lt.f32.partialorder %v458, 0.0004427343
    %v460 = vsel %vm459, %v457, %v454
    %v461 = vadd.f32 %v447, %v460
    %vm462 = vcmp.lt.s32.totalorder %v444, 1
    %v463 = vsel %vm462, %v446, %v461
    %464 = vst [vmem:[#allocation2] sm:$0x3] %v463
    // Predicated region
    $region22: #{tpu_custom_call.1} parent=1 // pred_check
      _
    $region23: #{tpu_custom_call.1} parent=1 // pred_check_branch
      %466 = sbr.rel (0) target = $region25
    $region24: #{tpu_custom_call.1} parent=1 // pred_region
      %s468 = ssub.s32 32, 32
      %469 = vsyncadd [#allocation3], %s468
      %s471 = sshll.u32 [#allocation2], 4
      %s472 = int_to_ptr.vmem [resolvable:$true] %s471
      %474 = dma.vmem_to_hbm [thread:$0]  %s472, 32, %s5, [#allocation3]
    $region25: #{tpu_custom_call.1} parent=1 // pred_fallthru
      _
    // Predicated region
    $region26: #{tpu_custom_call.1} parent=1 // pred_check
      _
    $region27: #{tpu_custom_call.1} parent=1 // pred_check_branch
      %476 = sbr.rel (0) target = $region29
    $region28: #{tpu_custom_call.1} parent=1 // pred_region
      %477 = dma.done [#allocation3], 32
    $region29: #{tpu_custom_call.1} parent=1 // pred_fallthru
      _
    %478 = vsyncpa [#allocation3], 1

</llo_original>
